<compile_context>
chip_gen: v6e
topology: v6e:2x2x1
jax: 0.10.0
libtpu: 0.0.40
codegen_flags: <defaults>
</compile_context>

<pallas_src>
import functools
import math

import jax
import jax.numpy as jnp
from jax.experimental import pallas as pl
from jax.experimental.pallas import tpu as pltpu


def _round_down(a, b):
    return (a // b) * b


def _pointwise_mlp_kernel(x_ref, w_ref, b_ref, o_ref, *, compute_dtype):
    # x_ref: (tm, K) row tile; w_ref: (K, tn) weight tile in (in, out) layout
    # (pre-transposed once in the wrapper); b_ref: (1, tn) f32 bias;
    # o_ref: (tm, tn) output tile.
    x = x_ref[...]
    if compute_dtype is not None:
        x = x.astype(compute_dtype)          # in-kernel cast: no extra HBM pass
    y = jnp.dot(x, w_ref[...], preferred_element_type=jnp.float32)  # MXU, f32 acc
    y = y + b_ref[...]                       # f32 epilogue on the VPU (v5e-safe)
    o_ref[...] = jnp.maximum(y, 0.0).astype(o_ref.dtype)


# VMEM budgets sized to fit v7x's 64 MiB/TC (double-buffered x/out tiles plus a
# single-buffered resident weight ~= 36 MiB worst case); trivially within the
# 128 MiB of v5e/v6e.
_RESIDENT_W_BYTES = 12 * 1024 * 1024     # max weight kept fully resident in VMEM
_X_TILE_BYTES = 6 * 1024 * 1024          # per-buffer row-tile budget for x
_VMEM_LIMIT_CAP = 48 * 1024 * 1024       # scoped-VMEM cap, safe on v7x


@functools.partial(jax.jit, static_argnames=("block_rows", "compute_dtype"))
def pointwise_mlp(x, weight, bias, *, block_rows=2048, compute_dtype=None):
    """y = relu(x @ weight.T + bias) over the last axis of x.

    x:      (..., H)
    weight: (H, H)   PyTorch nn.Linear layout (out_features, in_features)
    bias:   (H,)
    compute_dtype: optionally jnp.bfloat16 to feed the MXU in bf16 (f32
                   accumulate + f32 epilogue); default keeps x.dtype exactly.
    """
    orig_shape = x.shape
    H = orig_shape[-1]
    assert weight.shape == (H, H) and bias.shape == (H,)
    N = math.prod(orig_shape[:-1]) if len(orig_shape) > 1 else 1

    out_dtype = x.dtype
    cdt = None if compute_dtype is None else jnp.dtype(compute_dtype)
    w_dtype = cdt if cdt is not None else weight.dtype
    in_itemsize = jnp.dtype(x.dtype).itemsize
    out_itemsize = jnp.dtype(out_dtype).itemsize
    w_itemsize = jnp.dtype(w_dtype).itemsize

    # ---- lane packing (zero-copy): pack `rep` consecutive rows into one
    # 128-lane slab row and apply the block-diagonal weight kron(I_rep, W.T),
    # so small hidden dims (e.g. 32) get full-width loads / MXU / unmasked
    # stores.  Only done when the reshape is copy-free (N divisible by rep).
    rep = 1
    if H < 128 and 128 % H == 0:
        rep = 128 // H
        while rep > 1 and N % rep != 0:
            rep //= 2
    L = rep * H                       # lane width of x / out slabs
    M = N // rep                      # slab rows

    x_slab = x.reshape(M, L)          # pure reshape of contiguous x, no copy

    # ---- weight: one-time (in, out) transpose (+ kron packing); bias tile ---
    if rep > 1:
        w_t = jnp.kron(jnp.eye(rep, dtype=weight.dtype), weight.T)   # (L, L)
        b_l = jnp.tile(bias, rep)
    else:
        w_t = weight.T                                               # (H, H)
        b_l = bias
    w_t = w_t.astype(w_dtype)
    b_l = b_l.reshape(1, L).astype(jnp.float32)

    # ---- row tiling (no padding: ragged tail masked by Pallas) --------------
    sub = 8 if in_itemsize >= 4 else (16 if in_itemsize == 2 else 32)
    if M < sub:
        tm = M                        # block dim == full array dim (allowed)
    else:
        tm_cap = max(sub, _X_TILE_BYTES // (L * in_itemsize))
        tm = max(sub, _round_down(min(block_rows, tm_cap, M), sub))
    n_row_tiles = pl.cdiv(M, tm)

    kernel = functools.partial(_pointwise_mlp_kernel, compute_dtype=cdt)

    w_bytes = L * L * w_itemsize
    x_tile_bytes = tm * L * in_itemsize

    if w_bytes <= _RESIDENT_W_BYTES:
        # Whole weight resident in VMEM: x and y each stream exactly once.
        grid = (n_row_tiles,)
        in_specs = [
            pl.BlockSpec((tm, L), lambda i: (i, 0)),
            # Block index constant over the whole row sweep -> single-buffer
            # (double-buffering a resident tile only wastes VMEM).
            pl.BlockSpec((L, L), lambda i: (0, 0), pipeline_mode=pl.Buffered(1)),
            pl.BlockSpec((1, L), lambda i: (0, 0), pipeline_mode=pl.Buffered(1)),
        ]
        out_specs = pl.BlockSpec((tm, L), lambda i: (i, 0))
        # Row axis "parallel": v7x megacore shards the row sweep over its 2 TCs.
        dim_semantics = ("parallel",)
        out_tile_bytes = tm * L * out_itemsize
        vmem_need = w_bytes + 2 * x_tile_bytes + 2 * out_tile_bytes + L * 4
        bytes_accessed = (N * H * in_itemsize + N * H * out_itemsize
                          + L * L * w_itemsize + L * 4)
    else:
        # Very large hidden dim: stream the weight over out-feature tiles with
        # the row axis OUTER, so x is still read from HBM exactly once (the x
        # block index is constant across the inner j sweep -> no re-DMA).
        # TODO(synk): K-tiled path with a f32 VMEM accumulator so the weight is
        # also read only once for hidden dims where it cannot stay resident.
        tn = 256   # 256-wide N tiles feed the 2x256x256 MXUs on v6e/v7x.
        n_col_tiles = pl.cdiv(L, tn)
        grid = (n_row_tiles, n_col_tiles)
        in_specs = [
            pl.BlockSpec((tm, L), lambda i, j: (i, 0)),   # resident across j
            pl.BlockSpec((L, tn), lambda i, j: (0, j)),
            pl.BlockSpec((1, tn), lambda i, j: (0, j)),
        ]
        out_specs = pl.BlockSpec((tm, tn), lambda i, j: (i, j))
        dim_semantics = ("parallel", "parallel")
        out_tile_bytes = tm * tn * out_itemsize
        vmem_need = (2 * x_tile_bytes + 2 * out_tile_bytes
                     + 2 * L * tn * w_itemsize + 2 * tn * 4)
        bytes_accessed = (N * H * in_itemsize + N * H * out_itemsize
                          + n_row_tiles * (L * L * w_itemsize + L * 4))

    vmem_limit = int(min(max(vmem_need + vmem_need // 4 + (2 << 20), 16 << 20),
                         _VMEM_LIMIT_CAP))

    out = pl.pallas_call(
        kernel,
        out_shape=jax.ShapeDtypeStruct((M, L), out_dtype),
        grid_spec=pltpu.PrefetchScalarGridSpec(
            num_scalar_prefetch=0,
            grid=grid,
            in_specs=in_specs,
            out_specs=out_specs,
        ),
        compiler_params=pltpu.CompilerParams(
            dimension_semantics=dim_semantics,
            vmem_limit_bytes=vmem_limit,
        ),
        cost_estimate=pl.CostEstimate(
            flops=2 * N * H * H,
            transcendentals=0,
            bytes_accessed=int(bytes_accessed)),
    )(x_slab, w_t, b_l)

    # (M, L) -> (..., H): M*L == N*H, pure reshape, no copy / slice.
    return out.reshape(orig_shape)


if __name__ == "__main__":
    hidden_dim = 32
    n_points = 64          # e.g. nodes in a graph / points in a cloud

    key = jax.random.PRNGKey(0)
    kx, kw, kb = jax.random.split(key, 3)

    # Deterministic init mimicking PyTorch nn.Linear defaults:
    # weight, bias ~ U(-1/sqrt(fan_in), 1/sqrt(fan_in))
    bound = 1.0 / (hidden_dim ** 0.5)
    x = jax.random.normal(kx, (n_points, hidden_dim), dtype=jnp.float32)
    weight = jax.random.uniform(
        kw, (hidden_dim, hidden_dim), minval=-bound, maxval=bound,
        dtype=jnp.float32)
    bias = jax.random.uniform(
        kb, (hidden_dim,), minval=-bound, maxval=bound, dtype=jnp.float32)

    out = pointwise_mlp(x, weight, bias)
    out = jax.block_until_ready(out)

    # Reference check against plain JAX (same math as torch Linear + ReLU).
    ref = jnp.maximum(x @ weight.T + bias, 0.0)
    assert out.shape == (n_points, hidden_dim)
    assert jnp.allclose(out, ref, atol=1e-5, rtol=1e-5), "mismatch vs reference"

    print("KERNEL_OK")
</pallas_src>

<mosaic_0001>
module attributes {stable_mosaic.version = 11 : i64} {
  func.func @_pointwise_mlp_kernel(%arg0: i32, %arg1: memref<16x128xf32, #tpu.memory_space<vmem>>, %arg2: memref<128x128xf32, #tpu.memory_space<vmem>>, %arg3: memref<1x128xf32, #tpu.memory_space<vmem>>, %arg4: memref<16x128xf32, #tpu.memory_space<vmem>>) attributes {dimension_semantics = [#tpu.dimension_semantics<parallel>], iteration_bounds = array<i64: 1>, scalar_prefetch = 0 : i64, scratch_operands = 0 : i64, tpu.core_type = #tpu.core_type<tc>, window_params = [{transform_indices = @transform_0, window_bounds = array<i64: 16, 128>}, {pipeline_mode = #tpu.pipeline_mode<synchronous>, transform_indices = @transform_1, window_bounds = array<i64: 128, 128>}, {pipeline_mode = #tpu.pipeline_mode<synchronous>, transform_indices = @transform_2, window_bounds = array<i64: 1, 128>}, {transform_indices = @transform_3, window_bounds = array<i64: 16, 128>}]} {
    %c0 = arith.constant 0 : index
    %c0_0 = arith.constant 0 : index
    %0 = vector.load %arg1[%c0, %c0_0] : memref<16x128xf32, #tpu.memory_space<vmem>>, vector<16x128xf32>
    %c0_1 = arith.constant 0 : index
    %c0_2 = arith.constant 0 : index
    %1 = vector.load %arg2[%c0_1, %c0_2] : memref<128x128xf32, #tpu.memory_space<vmem>>, vector<128x128xf32>
    %cst = arith.constant dense<0.000000e+00> : vector<16x128xf32>
    %2 = tpu.matmul %0, %1, %cst {dimension_numbers = #tpu.dot_dimension_numbers<[1], [0], [0], [1], [0, 0, 1, 1], [], []>} : vector<16x128xf32>, vector<128x128xf32>, vector<16x128xf32> -> vector<16x128xf32>
    %c0_3 = arith.constant 0 : index
    %c0_4 = arith.constant 0 : index
    %3 = vector.load %arg3[%c0_3, %c0_4] : memref<1x128xf32, #tpu.memory_space<vmem>>, vector<1x128xf32>
    %4 = vector.broadcast %3 : vector<1x128xf32> to vector<16x128xf32>
    %5 = arith.addf %2, %4 : vector<16x128xf32>
    %cst_5 = arith.constant 0.000000e+00 : f32
    %6 = vector.broadcast %cst_5 : f32 to vector<16x128xf32>
    %7 = arith.maximumf %5, %6 : vector<16x128xf32>
    %c0_6 = arith.constant 0 : index
    %c0_7 = arith.constant 0 : index
    %8 = vector.load %arg4[%c0_6, %c0_7] : memref<16x128xf32, #tpu.memory_space<vmem>>, vector<16x128xf32>
    tpu.vector_store %arg4[%c0_6, %c0_7], %7 {strides = array<i32>} : memref<16x128xf32, #tpu.memory_space<vmem>>, vector<16x128xf32>,
    return
  }
  func.func @transform_0(%arg0: i32) -> (i32, i32) {
    %c0_i32 = arith.constant 0 : i32
    %c0_i32_0 = arith.constant 0 : i32
    return %arg0, %c0_i32 : i32, i32
  }
  func.func @transform_1(%arg0: i32) -> (i32, i32) {
    %c0_i32 = arith.constant 0 : i32
    %c0_i32_0 = arith.constant 0 : i32
    %c0_i32_1 = arith.constant 0 : i32
    return %c0_i32, %c0_i32_0 : i32, i32
  }
  func.func @transform_2(%arg0: i32) -> (i32, i32) {
    %c0_i32 = arith.constant 0 : i32
    %c0_i32_0 = arith.constant 0 : i32
    %c0_i32_1 = arith.constant 0 : i32
    return %c0_i32, %c0_i32_0 : i32, i32
  }
  func.func @transform_3(%arg0: i32) -> (i32, i32) {
    %c0_i32 = arith.constant 0 : i32
    %c0_i32_0 = arith.constant 0 : i32
    return %arg0, %c0_i32 : i32, i32
  }
}

</mosaic_0001>

<llo_original>
// kernel: tile.8
$region0: #{tile.8}
  #allocation0 [shape = 's32[1]{0}', space=sflag, size = 0x4, scoped, tag = 'scoped memory for tile.8']
  %s0 = inlined_call_operand.vmem [shape: f32[32], index: 0, kind: input, shape index: {}]
  %s1 = inlined_call_operand.vmem [shape: f32[4,32], index: 1, kind: output, shape index: {}]
  // Predicated region
  $region2: #{tile.8} parent=0 // pred_check
    _
  $region3: #{tile.8} parent=0 // pred_check_branch
    %3 = sbr.rel (0) target = $region5
  $region4: #{tile.8} parent=0 // pred_region
    _
  $region5: #{tile.8} parent=0 // pred_fallthru
    _
  %v4 = vld [vmem:[%s0] ss:$0 sm:$0xff]
  %5 = vst [vmem:[%s1] sm:$0xf] %v4

// kernel: tile.9
$region0: #{tile.9}
  %s0 = inlined_call_operand.vmem [shape: f32[4,32], index: 0, kind: input, shape index: {}]
  %s1 = inlined_call_operand.vmem [shape: f32[1,128], index: 1, kind: output, shape index: {}]
  $region1: #{tile.9} parent=0
    #allocation0 [shape = 'u8[4096]{0}', space=vmem, size = 0x1000, scoped, tag = 'scoped mem for output reshape']
    #allocation1 [shape = 'u8[4096]{0}', space=vmem, size = 0x1000, scoped, tag = 'scoped mem for input reshape']
    %s3 = sshll.u32 1, 4
    %s4 = ssub.s32 %s3, 1
    %v5 = vld [vmem:[%s0] sm:%s4]
    %6 = vst [vmem:[#allocation1] sm:%s4] %v5
    %v7 = vld [vmem:[#allocation1] sm:$0x1]
    %vm8 = vcmask 261120
    %9 = vst.msk [vmem:[#allocation0] sm:$0x1] %vm8, %v7
    %s10 = scalar_lea.vmem [#allocation1], 3
    %v11 = vld [vmem:[%s10] sm:$0x1]
    %12 = vrot.lane.b32.xlu0 %v11, 96
    %v13 = vpop.permute.xlu0 %12
    %vm14 = vcmask 1048320
    %15 = vst.msk [vmem:[#allocation0] sm:$0x1] %vm14, %v13
    %s16 = scalar_lea.vmem [#allocation1], 2
    %v17 = vld [vmem:[%s16] sm:$0x1]
    %18 = vrot.lane.b32.xlu0 %v17, 64
    %v19 = vpop.permute.xlu0 %18
    %vm20 = vcmask 785920
    %21 = vst.msk [vmem:[#allocation0] sm:$0x1] %vm20, %v19
    %s22 = scalar_lea.vmem [#allocation1], 1
    %v23 = vld [vmem:[%s22] sm:$0x1]
    %24 = vrot.lane.b32.xlu0 %v23, 32
    %v25 = vpop.permute.xlu0 %24
    %vm26 = vcmask 523520
    %27 = vst.msk [vmem:[#allocation0] sm:$0x1] %vm26, %v25
    %s29 = sshll.u32 1, 1
    %s30 = ssub.s32 %s29, 1
    %v32 = vld [vmem:[#allocation0] sm:%s30]
    %s33 = sshll.u32 1, 1
    %s34 = ssub.s32 %s33, 1
    %35 = vst [vmem:[%s1] sm:%s34] %v32

// kernel: pointwise_mlp.1
$region0: #{pointwise_mlp.1}
  #allocation0 [shape = 'u32[]', space=smem, size = 0x4, offset = 0x4, fixed_abs, tag = 'smem constant byte address 0x4 - core index']
  #allocation1 [shape = 'u32[144,128]{1,0:T(1,128)}', space=vmem, size = 0x12000, scoped, tag = 'internal scratch']
  %s0 = inlined_call_operand.vmem [shape: f32[16,128], index: 0, kind: input, shape index: {}]
  %s1 = inlined_call_operand.vmem [shape: f32[128,128], index: 1, kind: input, shape index: {}]
  %s2 = inlined_call_operand.vmem [shape: f32[1,128], index: 2, kind: input, shape index: {}]
  %s3 = inlined_call_operand.vmem [shape: f32[16,128], index: 3, kind: output, shape index: {}]
  %s4 = sld [smem:[#allocation0]]
  $region22: #{pointwise_mlp.1} parent=0
    _
  %s6 = ssub.s32 1, %s4
  %s7 = scalar_select 0, %s6, %s4
  // Predicated region
  $region2: #{pointwise_mlp.1} parent=0 // pred_check
    _
  $region3: #{pointwise_mlp.1} parent=0 // pred_check_branch
    %9 = sbr.rel (0) target = $region5
  $region4: #{pointwise_mlp.1} parent=0 // pred_region
    _
  $region5: #{pointwise_mlp.1} parent=0 // pred_fallthru
    _
  // Predicated region
  $region6: #{pointwise_mlp.1} parent=0 // pred_check
    _
  $region7: #{pointwise_mlp.1} parent=0 // pred_check_branch
    %11 = sbr.rel (0) target = $region9
  $region8: #{pointwise_mlp.1} parent=0 // pred_region
    _
  $region9: #{pointwise_mlp.1} parent=0 // pred_fallthru
    _
  // Predicated region
  $region10: #{pointwise_mlp.1} parent=0 // pred_check
    _
  $region11: #{pointwise_mlp.1} parent=0 // pred_check_branch
    %13 = sbr.rel (0) target = $region13
  $region12: #{pointwise_mlp.1} parent=0 // pred_region
    _
  $region13: #{pointwise_mlp.1} parent=0 // pred_fallthru
    _
  %v14 = vld [vmem:[%s0] sm:$0xff]
  %v15 = vld [vmem:[%s0 + $0x8] sm:$0xff]
  %v16 = vld [vmem:[%s1] sm:$0xff]
  %v17 = vld [vmem:[%s1 + $0x8] sm:$0xff]
  %v18 = vld [vmem:[%s1 + $0x10] sm:$0xff]
  %v19 = vld [vmem:[%s1 + $0x18] sm:$0xff]
  %v20 = vld [vmem:[%s1 + $0x20] sm:$0xff]
  %v21 = vld [vmem:[%s1 + $0x28] sm:$0xff]
  %v22 = vld [vmem:[%s1 + $0x30] sm:$0xff]
  %v23 = vld [vmem:[%s1 + $0x38] sm:$0xff]
  %v24 = vld [vmem:[%s1 + $0x40] sm:$0xff]
  %v25 = vld [vmem:[%s1 + $0x48] sm:$0xff]
  %v26 = vld [vmem:[%s1 + $0x50] sm:$0xff]
  %v27 = vld [vmem:[%s1 + $0x58] sm:$0xff]
  %v28 = vld [vmem:[%s1 + $0x60] sm:$0xff]
  %v29 = vld [vmem:[%s1 + $0x68] sm:$0xff]
  %v30 = vld [vmem:[%s1 + $0x70] sm:$0xff]
  %v31 = vld [vmem:[%s1 + $0x78] sm:$0xff]
  %v32 = vld [vmem:[%s2] sm:$0x1]
  %v34 = vlaneseq
  %v35 = vshrl.u32 %v34, 7
  %v36 = vsub.s32 0, %v35
  %v37 = vrot.slane %v32, %v36
  %39 = vmatprep.subr.mxu0 0.0
  %40 = vmatpush1.msra.mxu0 %v31
  %41 = vmatprep.subr.mxu0 0.0
  %42 = vmatpush1.msra.mxu0 %v30
  %43 = vmatprep.subr.mxu0 0.0
  %44 = vmatpush1.msra.mxu0 %v29
  %45 = vmatprep.subr.mxu0 0.0
  %46 = vmatpush1.msra.mxu0 %v28
  %47 = vmatprep.subr.mxu0 0.0
  %48 = vmatpush1.msra.mxu0 %v27
  %49 = vmatprep.subr.mxu0 0.0
  %50 = vmatpush1.msra.mxu0 %v26
  %51 = vmatprep.subr.mxu0 0.0
  %52 = vmatpush1.msra.mxu0 %v25
  %53 = vmatprep.subr.mxu0 0.0
  %54 = vmatpush1.msra.mxu0 %v24
  %55 = vmatprep.subr.mxu0 0.0
  %56 = vmatpush1.msra.mxu0 %v23
  %57 = vmatprep.subr.mxu0 0.0
  %58 = vmatpush1.msra.mxu0 %v22
  %59 = vmatprep.subr.mxu0 0.0
  %60 = vmatpush1.msra.mxu0 %v21
  %61 = vmatprep.subr.mxu0 0.0
  %62 = vmatpush1.msra.mxu0 %v20
  %63 = vmatprep.subr.mxu0 0.0
  %64 = vmatpush1.msra.mxu0 %v19
  %65 = vmatprep.subr.mxu0 0.0
  %66 = vmatpush1.msra.mxu0 %v18
  %67 = vmatprep.subr.mxu0 0.0
  %68 = vmatpush1.msra.mxu0 %v17
  %69 = vmatprep.subr.mxu0 0.0
  %70 = vmatpush1.msra.mxu0 %v16
  %71 = vmatprep.subr.mxu0 0.0
  %72 = vmatpush2.msra.mxu0 0.0
  %73 = vmatprep.subr.mxu0 0.0
  %74 = vmatpush2.msra.mxu0 0.0
  %75 = vmatprep.subr.mxu0 0.0
  %76 = vmatpush2.msra.mxu0 0.0
  %77 = vmatprep.subr.mxu0 0.0
  %78 = vmatpush2.msra.mxu0 0.0
  %79 = vmatprep.subr.mxu0 0.0
  %80 = vmatpush2.msra.mxu0 0.0
  %81 = vmatprep.subr.mxu0 0.0
  %82 = vmatpush2.msra.mxu0 0.0
  %83 = vmatprep.subr.mxu0 0.0
  %84 = vmatpush2.msra.mxu0 0.0
  %85 = vmatprep.subr.mxu0 0.0
  %86 = vmatpush2.msra.mxu0 0.0
  %87 = vmatprep.subr.mxu0 0.0
  %88 = vmatpush2.msra.mxu0 0.0
  %89 = vmatprep.subr.mxu0 0.0
  %90 = vmatpush2.msra.mxu0 0.0
  %91 = vmatprep.subr.mxu0 0.0
  %92 = vmatpush2.msra.mxu0 0.0
  %93 = vmatprep.subr.mxu0 0.0
  %94 = vmatpush2.msra.mxu0 0.0
  %95 = vmatprep.subr.mxu0 0.0
  %96 = vmatpush2.msra.mxu0 0.0
  %97 = vmatprep.subr.mxu0 0.0
  %98 = vmatpush2.msra.mxu0 0.0
  %99 = vmatprep.subr.mxu0 0.0
  %100 = vmatpush2.msra.mxu0 0.0
  %101 = vmatprep.subr.mxu0 0.0
  %102 = vmatpush2.msra.mxu0 0.0
  %103 = vmatprep.mubr.f32.mxu0 0.0
  %104 = vmatmul.mubr.f32.gmra.mxu0 %v14
  %v105 = vpop.f32.mrf.mxu0
  %v106 = vadd.f32 %v37, %v105
  %v107 = vpop.f32.mrf.mxu0
  %108 = vmatprep.mubr.f32.mxu0 0.0
  %109 = vmatmul.mubr.f32.gmra.mxu0 %v15
  %v110 = vpop.f32.mrf.mxu0
  %v111 = vadd.f32 %v37, %v110
  %v112 = vpop.f32.mrf.mxu0
  %113 = vdwg.mxu0
  %v114 = vmax.f32 %v106, 0.0
  %v115 = vmax.f32 %v111, 0.0
  %116 = vst [vmem:[%s3] sm:$0xff] %v114
  %117 = vst [vmem:[%s3 + $0x8] sm:$0xff] %v115
  // Predicated region
  $region14: #{pointwise_mlp.1} parent=0 // pred_check
    _
  $region15: #{pointwise_mlp.1} parent=0 // pred_check_branch
    %119 = sbr.rel (0) target = $region17
  $region16: #{pointwise_mlp.1} parent=0 // pred_region
    _
  $region17: #{pointwise_mlp.1} parent=0 // pred_fallthru
    _
  // Predicated region
  $region18: #{pointwise_mlp.1} parent=0 // pred_check
    _
  $region19: #{pointwise_mlp.1} parent=0 // pred_check_branch
    %121 = sbr.rel (0) target = $region21
  $region20: #{pointwise_mlp.1} parent=0 // pred_region
    _
  $region21: #{pointwise_mlp.1} parent=0 // pred_fallthru
    _

</llo_original>
